<compile_context>
chip_gen: v5e
topology: v5e:2x2
jax: 0.10.0
libtpu: 0.0.40
codegen_flags: <defaults>
</compile_context>

<pallas_src>
import math

import jax
import jax.numpy as jnp
import numpy as np
from jax import lax
from jax.experimental import pallas as pl
from jax.experimental.pallas import tpu as pltpu

LANES = 128
ACC_ROWS = 32           # accumulator sublane-rows: 4 vregs -> 4 indep add chains
F32_TILE_ROWS = 4096    # (4096,128) f32 block  = 2 MiB / input / pipeline buffer
BF16_TILE_ROWS = 8192   # (8192,128) bf16 block = 2 MiB / input / pipeline buffer


def _round_up(x, m):
    return (x + m - 1) // m * m


def _cdiv(a, b):
    return -(-a // b)


def _num_tensorcores():
    """Best-effort TensorCores-per-chip (v7x: 2, v5e/v6e: 1). Defaults to 1."""
    try:
        info = pltpu.get_tpu_info()
    except Exception:
        return 1
    for name in ("tensorcores_per_chip", "num_tensorcores", "num_cores",
                 "cores_per_chip", "tensorcore_count"):
        v = getattr(info, name, None)
        if isinstance(v, int) and v > 0:
            return max(1, min(int(v), 8))
    return 1


def _make_kernel(tr, steps, rows_valid, needs_mask, binary_targets):
    def kernel(p_ref, t_ref, out_ref):
        """Accumulate vreg-shaped partial sums for one chunk of rows.

        out_ref block: (1, 3, ACC_ROWS, 128) f32, resident across step axis.
          [0] sum(p * t)   [1] sum(p) + sum(t)   [2] sum( -(per-element BCE) )
        """
        c = pl.program_id(0)
        s = pl.program_id(1)

        @pl.when(s == 0)
        def _():
            out_ref[...] = jnp.zeros_like(out_ref)

        p = p_ref[...].astype(jnp.float32)
        t = t_ref[...].astype(jnp.float32)

        if needs_mask:
            # Ragged tail handled in-kernel (no wrapper-side full-array pad):
            # rows at/after `rows_valid` are zeroed, so they contribute exactly
            # 0 to all three accumulators (p=0,t=0 -> p*t=0, p+t=0, -bce=0).
            start = (c * steps + s) * tr
            row_id = start + lax.broadcasted_iota(jnp.int32, (tr, LANES), 0)
            valid = row_id < rows_valid
            p = jnp.where(valid, p, 0.0)
            t = jnp.where(valid, t, 0.0)

        if binary_targets:
            # Opt-in fast path for hard {0,1} labels: one log per element.
            sel = jnp.where(t > 0.5, p, 1.0 - p)
            nbce = jnp.maximum(jnp.log(sel), -100.0)           # == -BCE_elem
        else:
            # -(BCE_elem) = t*log(p) + (1-t)*log(1-p); torch clamps log at -100.
            log_p = jnp.maximum(jnp.log(p), -100.0)
            log_1mp = jnp.maximum(jnp.log(1.0 - p), -100.0)
            nbce = t * (log_p - log_1mp) + log_1mp             # == -BCE_elem

        def acc_sum(x):
            # (tr,128) -> (tr/32, 32, 128) -> (32,128): four independent vreg
            # add chains per quantity; pure VPU, no XLU / SMEM in the hot loop.
            return jnp.sum(x.reshape(-1, ACC_ROWS, LANES), axis=0)

        out_ref[0, 0] += acc_sum(p * t)
        out_ref[0, 1] += acc_sum(p + t)
        out_ref[0, 2] += acc_sum(nbce)

    return kernel


def dice_bce_loss(inputs, targets, *, smooth=1.0, binary_targets=False,
                  num_chunks=None):
    """inputs: probabilities in [0,1]; targets: same shape.

    Inputs are streamed in their native dtype (bf16 recommended on v5e/v6e:
    HBM-bound regime); all accumulation is float32.
    """
    assert inputs.shape == targets.shape
    total_n = int(math.prod(inputs.shape))

    p_flat = jnp.ravel(inputs)          # free (bitcast) reshape, native dtype
    t_flat = jnp.ravel(targets)

    lane_pad = (-total_n) % LANES
    if lane_pad:
        # TODO(synk): rare non-128-divisible sizes still pay one full-copy pad
        # (needed to form a lane-dense 2-D view); common segmentation shapes
        # take the zero-copy path and the row tail is masked in-kernel.
        p_flat = jnp.pad(p_flat, (0, lane_pad))
        t_flat = jnp.pad(t_flat, (0, lane_pad))
    rows = (total_n + lane_pad) // LANES
    p2d = p_flat.reshape(rows, LANES)
    t2d = t_flat.reshape(rows, LANES)

    itemsize = jnp.dtype(inputs.dtype).itemsize
    target_rows = BF16_TILE_ROWS if itemsize <= 2 else F32_TILE_ROWS
    tr = min(target_rows, _round_up(rows, ACC_ROWS))

    if num_chunks is None:
        num_chunks = _num_tensorcores()
    if rows < num_chunks * tr:          # not enough work to split across cores
        num_chunks = 1
    steps = _cdiv(rows, tr * num_chunks)
    nblocks = _cdiv(rows, tr)
    needs_mask = (num_chunks * steps * tr) != rows

    def in_map(c, s):
        # Clamp so over-hanging chunk blocks never index past the array; their
        # contribution is zeroed by the in-kernel row mask.
        return (jnp.minimum(c * steps + s, nblocks - 1), 0)

    kernel = _make_kernel(tr, steps, rows, needs_mask, binary_targets)

    out_bytes = num_chunks * 3 * ACC_ROWS * LANES * 4
    cost = pl.CostEstimate(
        flops=12 * total_n,
        transcendentals=(1 if binary_targets else 2) * total_n,
        bytes_accessed=2 * total_n * itemsize + out_bytes,
    )

    dim_sem = (
        pltpu.CORE_PARALLEL if num_chunks > 1 else pltpu.ARBITRARY,
        pltpu.ARBITRARY,
    )

    partials = pl.pallas_call(
        kernel,
        out_shape=jax.ShapeDtypeStruct(
            (num_chunks, 3, ACC_ROWS, LANES), jnp.float32
        ),
        grid_spec=pltpu.PrefetchScalarGridSpec(
            num_scalar_prefetch=0,
            grid=(num_chunks, steps),
            in_specs=[
                pl.BlockSpec((tr, LANES), in_map),
                pl.BlockSpec((tr, LANES), in_map),
            ],
            out_specs=pl.BlockSpec(
                (1, 3, ACC_ROWS, LANES), lambda c, s: (c, 0, 0, 0)
            ),
        ),
        compiler_params=pltpu.CompilerParams(dimension_semantics=dim_sem),
        cost_estimate=cost,
    )(p2d, t2d)

    # Tiny final combine (num_chunks * 3 * 32 * 128 floats) in plain JAX.
    sums = jnp.sum(partials, axis=(0, 2, 3))                  # (3,)
    inter, sum_p_plus_t, nbce_sum = sums[0], sums[1], sums[2]
    dice_loss = 1.0 - (2.0 * inter + smooth) / (sum_p_plus_t + smooth)
    bce_loss = -nbce_sum / jnp.float32(total_n)
    return dice_loss + bce_loss


def _reference(inputs, targets, smooth=1.0):
    p = inputs.astype(jnp.float32).reshape(-1)
    t = targets.astype(jnp.float32).reshape(-1)
    inter = jnp.sum(p * t)
    dice = 1.0 - (2.0 * inter + smooth) / (jnp.sum(p) + jnp.sum(t) + smooth)
    log_p = jnp.maximum(jnp.log(p), -100.0)
    log_1mp = jnp.maximum(jnp.log(1.0 - p), -100.0)
    bce = jnp.mean(-(t * log_p + (1.0 - t) * log_1mp))
    return dice + bce


if __name__ == "__main__":
    key = jax.random.PRNGKey(0)
    k1, k2, k3, k4 = jax.random.split(key, 4)

    # Test 1: NCHW, element count divisible by 128, float32 (zero-copy path).
    shape = (2, 4, 16, 16)
    probs = jax.nn.sigmoid(jax.random.normal(k1, shape, dtype=jnp.float32))
    targs = jax.random.bernoulli(k2, 0.5, shape).astype(jnp.float32)
    got = jax.block_until_ready(dice_bce_loss(probs, targs))
    ref = jax.block_until_ready(_reference(probs, targs))
    np.testing.assert_allclose(np.asarray(got), np.asarray(ref),
                               rtol=1e-5, atol=1e-5)

    # Test 2: size NOT divisible by 128 (exercises the lane-pad fallback +
    # in-kernel row mask).
    shape2 = (2, 3, 17, 19)
    probs2 = jax.nn.sigmoid(jax.random.normal(k3, shape2, dtype=jnp.float32))
    targs2 = jax.random.bernoulli(k4, 0.5, shape2).astype(jnp.float32)
    got2 = jax.block_until_ready(dice_bce_loss(probs2, targs2))
    ref2 = jax.block_until_ready(_reference(probs2, targs2))
    np.testing.assert_allclose(np.asarray(got2), np.asarray(ref2),
                               rtol=1e-5, atol=1e-5)

    # Test 3: bf16 inputs streamed natively (half the HBM bytes).
    probs3 = probs.astype(jnp.bfloat16)
    targs3 = targs.astype(jnp.bfloat16)
    got3 = jax.block_until_ready(dice_bce_loss(probs3, targs3))
    ref3 = jax.block_until_ready(_reference(probs3, targs3))
    np.testing.assert_allclose(np.asarray(got3), np.asarray(ref3),
                               rtol=1e-4, atol=1e-4)

    # Test 4: gated single-log fast path (valid here: targets are hard {0,1}).
    got4 = jax.block_until_ready(dice_bce_loss(probs, targs,
                                               binary_targets=True))
    np.testing.assert_allclose(np.asarray(got4), np.asarray(ref),
                               rtol=1e-5, atol=1e-5)

    print("KERNEL_OK")
</pallas_src>

<mosaic_0001>
module attributes {stable_mosaic.version = 11 : i64} {
  func.func @kernel(%arg0: i32, %arg1: i32, %arg2: memref<32x128xf32, #tpu.memory_space<vmem>>, %arg3: memref<32x128xf32, #tpu.memory_space<vmem>>, %arg4: memref<1x3x32x128xf32, #tpu.memory_space<vmem>>) attributes {dimension_semantics = [#tpu.dimension_semantics<arbitrary>, #tpu.dimension_semantics<arbitrary>], iteration_bounds = array<i64: 1, 1>, scalar_prefetch = 0 : i64, scratch_operands = 0 : i64, tpu.core_type = #tpu.core_type<tc>, window_params = [{transform_indices = @transform_0, window_bounds = array<i64: 32, 128>}, {transform_indices = @transform_1, window_bounds = array<i64: 32, 128>}, {transform_indices = @transform_2, window_bounds = array<i64: 1, 3, 32, 128>}]} {
    %c0_i32 = arith.constant 0 : i32
    %0 = arith.cmpi eq, %arg1, %c0_i32 : i32
    %1 = arith.extui %0 : i1 to i32
    %c0_i32_0 = arith.constant 0 : i32
    %2 = arith.cmpi ne, %1, %c0_i32_0 : i32
    scf.if %2 {
      %cst_33 = arith.constant 0.000000e+00 : f32
      %54 = vector.broadcast %cst_33 : f32 to vector<1x3x32x128xf32>
      %c0_34 = arith.constant 0 : index
      %c0_35 = arith.constant 0 : index
      %c0_36 = arith.constant 0 : index
      %c0_37 = arith.constant 0 : index
      %55 = vector.load %arg4[%c0_34, %c0_35, %c0_36, %c0_37] : memref<1x3x32x128xf32, #tpu.memory_space<vmem>>, vector<1x3x32x128xf32>
      tpu.vector_store %arg4[%c0_34, %c0_35, %c0_36, %c0_37], %54 {strides = array<i32>} : memref<1x3x32x128xf32, #tpu.memory_space<vmem>>, vector<1x3x32x128xf32>,
    } else {
    }
    %c0 = arith.constant 0 : index
    %c0_1 = arith.constant 0 : index
    %3 = vector.load %arg2[%c0, %c0_1] : memref<32x128xf32, #tpu.memory_space<vmem>>, vector<32x128xf32>
    %c0_2 = arith.constant 0 : index
    %c0_3 = arith.constant 0 : index
    %4 = vector.load %arg3[%c0_2, %c0_3] : memref<32x128xf32, #tpu.memory_space<vmem>>, vector<32x128xf32>
    %c1_i32 = arith.constant 1 : i32
    %5 = arith.muli %arg0, %c1_i32 : i32
    %6 = arith.addi %5, %arg1 : i32
    %c32_i32 = arith.constant 32 : i32
    %7 = arith.muli %6, %c32_i32 : i32
    %8 = tpu.iota {dimensions = array<i32: 0>} : vector<32x128xi32>
    %9 = vector.broadcast %7 : i32 to vector<32x128xi32>
    %10 = arith.addi %9, %8 : vector<32x128xi32>
    %c16_i32 = arith.constant 16 : i32
    %11 = vector.broadcast %c16_i32 : i32 to vector<32x128xi32>
    %12 = arith.cmpi slt, %10, %11 : vector<32x128xi32>
    %cst = arith.constant 0.000000e+00 : f32
    %13 = vector.broadcast %cst : f32 to vector<32x128xf32>
    %14 = arith.select %12, %3, %13 : vector<32x128xi1>, vector<32x128xf32>
    %cst_4 = arith.constant 0.000000e+00 : f32
    %15 = vector.broadcast %cst_4 : f32 to vector<32x128xf32>
    %16 = arith.select %12, %4, %15 : vector<32x128xi1>, vector<32x128xf32>
    %17 = math.log %14 : vector<32x128xf32>
    %cst_5 = arith.constant -1.000000e+02 : f32
    %18 = vector.broadcast %cst_5 : f32 to vector<32x128xf32>
    %19 = arith.maximumf %17, %18 : vector<32x128xf32>
    %cst_6 = arith.constant 1.000000e+00 : f32
    %20 = vector.broadcast %cst_6 : f32 to vector<32x128xf32>
    %21 = arith.subf %20, %14 : vector<32x128xf32>
    %22 = math.log %21 : vector<32x128xf32>
    %cst_7 = arith.constant -1.000000e+02 : f32
    %23 = vector.broadcast %cst_7 : f32 to vector<32x128xf32>
    %24 = arith.maximumf %22, %23 : vector<32x128xf32>
    %25 = arith.subf %19, %24 : vector<32x128xf32>
    %26 = arith.mulf %16, %25 : vector<32x128xf32>
    %27 = arith.addf %26, %24 : vector<32x128xf32>
    %c0_8 = arith.constant 0 : index
    %c0_9 = arith.constant 0 : index
    %c0_10 = arith.constant 0 : index
    %c0_11 = arith.constant 0 : index
    %28 = vector.load %arg4[%c0_8, %c0_9, %c0_10, %c0_11] : memref<1x3x32x128xf32, #tpu.memory_space<vmem>>, vector<1x1x32x128xf32>
    %29 = vector.shape_cast %28 : vector<1x1x32x128xf32> to vector<32x128xf32>
    %30 = arith.mulf %14, %16 : vector<32x128xf32>
    %31 = vector.shape_cast %30 : vector<32x128xf32> to vector<1x32x128xf32>
    %cst_12 = arith.constant dense<0.000000e+00> : vector<32x128xf32>
    %32 = vector.multi_reduction <add>, %31, %cst_12 [0] : vector<1x32x128xf32> to vector<32x128xf32>
    %33 = arith.addf %29, %32 : vector<32x128xf32>
    %c0_13 = arith.constant 0 : index
    %c0_14 = arith.constant 0 : index
    %c0_15 = arith.constant 0 : index
    %c0_16 = arith.constant 0 : index
    %34 = vector.load %arg4[%c0_13, %c0_14, %c0_15, %c0_16] : memref<1x3x32x128xf32, #tpu.memory_space<vmem>>, vector<1x1x32x128xf32>
    %35 = vector.shape_cast %34 : vector<1x1x32x128xf32> to vector<32x128xf32>
    %36 = vector.shape_cast %33 : vector<32x128xf32> to vector<1x1x32x128xf32>
    tpu.vector_store %arg4[%c0_13, %c0_14, %c0_15, %c0_16], %36 {strides = array<i32>} : memref<1x3x32x128xf32, #tpu.memory_space<vmem>>, vector<1x1x32x128xf32>,
    %c0_17 = arith.constant 0 : index
    %c1 = arith.constant 1 : index
    %c0_18 = arith.constant 0 : index
    %c0_19 = arith.constant 0 : index
    %37 = vector.load %arg4[%c0_17, %c1, %c0_18, %c0_19] : memref<1x3x32x128xf32, #tpu.memory_space<vmem>>, vector<1x1x32x128xf32>
    %38 = vector.shape_cast %37 : vector<1x1x32x128xf32> to vector<32x128xf32>
    %39 = arith.addf %14, %16 : vector<32x128xf32>
    %40 = vector.shape_cast %39 : vector<32x128xf32> to vector<1x32x128xf32>
    %cst_20 = arith.constant dense<0.000000e+00> : vector<32x128xf32>
    %41 = vector.multi_reduction <add>, %40, %cst_20 [0] : vector<1x32x128xf32> to vector<32x128xf32>
    %42 = arith.addf %38, %41 : vector<32x128xf32>
    %c0_21 = arith.constant 0 : index
    %c1_22 = arith.constant 1 : index
    %c0_23 = arith.constant 0 : index
    %c0_24 = arith.constant 0 : index
    %43 = vector.load %arg4[%c0_21, %c1_22, %c0_23, %c0_24] : memref<1x3x32x128xf32, #tpu.memory_space<vmem>>, vector<1x1x32x128xf32>
    %44 = vector.shape_cast %43 : vector<1x1x32x128xf32> to vector<32x128xf32>
    %45 = vector.shape_cast %42 : vector<32x128xf32> to vector<1x1x32x128xf32>
    tpu.vector_store %arg4[%c0_21, %c1_22, %c0_23, %c0_24], %45 {strides = array<i32>} : memref<1x3x32x128xf32, #tpu.memory_space<vmem>>, vector<1x1x32x128xf32>,
    %c0_25 = arith.constant 0 : index
    %c2 = arith.constant 2 : index
    %c0_26 = arith.constant 0 : index
    %c0_27 = arith.constant 0 : index
    %46 = vector.load %arg4[%c0_25, %c2, %c0_26, %c0_27] : memref<1x3x32x128xf32, #tpu.memory_space<vmem>>, vector<1x1x32x128xf32>
    %47 = vector.shape_cast %46 : vector<1x1x32x128xf32> to vector<32x128xf32>
    %48 = vector.shape_cast %27 : vector<32x128xf32> to vector<1x32x128xf32>
    %cst_28 = arith.constant dense<0.000000e+00> : vector<32x128xf32>
    %49 = vector.multi_reduction <add>, %48, %cst_28 [0] : vector<1x32x128xf32> to vector<32x128xf32>
    %50 = arith.addf %47, %49 : vector<32x128xf32>
    %c0_29 = arith.constant 0 : index
    %c2_30 = arith.constant 2 : index
    %c0_31 = arith.constant 0 : index
    %c0_32 = arith.constant 0 : index
    %51 = vector.load %arg4[%c0_29, %c2_30, %c0_31, %c0_32] : memref<1x3x32x128xf32, #tpu.memory_space<vmem>>, vector<1x1x32x128xf32>
    %52 = vector.shape_cast %51 : vector<1x1x32x128xf32> to vector<32x128xf32>
    %53 = vector.shape_cast %50 : vector<32x128xf32> to vector<1x1x32x128xf32>
    tpu.vector_store %arg4[%c0_29, %c2_30, %c0_31, %c0_32], %53 {strides = array<i32>} : memref<1x3x32x128xf32, #tpu.memory_space<vmem>>, vector<1x1x32x128xf32>,
    return
  }
  func.func @transform_0(%arg0: i32, %arg1: i32) -> (i32, i32) {
    %c1_i32 = arith.constant 1 : i32
    %0 = arith.muli %arg0, %c1_i32 : i32
    %1 = arith.addi %0, %arg1 : i32
    %c0_i32 = arith.constant 0 : i32
    %2 = arith.minsi %1, %c0_i32 : i32
    %c0_i32_0 = arith.constant 0 : i32
    %c0_i32_1 = arith.constant 0 : i32
    return %2, %c0_i32_0 : i32, i32
  }
  func.func @transform_1(%arg0: i32, %arg1: i32) -> (i32, i32) {
    %c1_i32 = arith.constant 1 : i32
    %0 = arith.muli %arg0, %c1_i32 : i32
    %1 = arith.addi %0, %arg1 : i32
    %c0_i32 = arith.constant 0 : i32
    %2 = arith.minsi %1, %c0_i32 : i32
    %c0_i32_0 = arith.constant 0 : i32
    %c0_i32_1 = arith.constant 0 : i32
    return %2, %c0_i32_0 : i32, i32
  }
  func.func @transform_2(%arg0: i32, %arg1: i32) -> (i32, i32, i32, i32) {
    %c0_i32 = arith.constant 0 : i32
    %c0_i32_0 = arith.constant 0 : i32
    %c0_i32_1 = arith.constant 0 : i32
    %c0_i32_2 = arith.constant 0 : i32
    return %arg0, %c0_i32, %c0_i32_0, %c0_i32_1 : i32, i32, i32, i32
  }
}

</mosaic_0001>

<llo_original>
// kernel: tpu_custom_call.1
$region0: #{tpu_custom_call.1}
  #allocation0 [shape = 'u32[]', space=smem, size = 0x4, offset = 0x4, fixed_abs, tag = 'smem constant byte address 0x4 - core index']
  #allocation1 [shape = 'u32[72,128]{1,0:T(1,128)}', space=vmem, size = 0x9000, scoped, tag = 'internal scratch']
  %s0 = inlined_call_operand.hbm [shape: f32[16,128], index: 0, kind: input, shape index: {}]
  %s1 = inlined_call_operand.hbm [shape: f32[16,128], index: 1, kind: input, shape index: {}]
  %s2 = inlined_call_operand.hbm [shape: f32[1,3,32,128], index: 2, kind: output, shape index: {}]
  %s3 = sld [smem:[#allocation0]]
  $region30: #{tpu_custom_call.1} parent=0
    _
  %s5 = ssub.s32 1, %s3
  %s6 = scalar_select 0, %s5, %s3
  $region1: #{tpu_custom_call.1} parent=0
    #allocation2 [shape = 'u8[16384]{0}', space=vmem, size = 0x4000, scoped, tag = 'input window, operand 0, single buffered']
    #allocation3 [shape = 's32[1]{0}', space=sflag, size = 0x4, scoped, tag = 'scoped memory for tpu_custom_call.1']
    #allocation4 [shape = 's32[1]{0}', space=sflag, size = 0x4, scoped, tag = 'scoped memory for tpu_custom_call.1']
    #allocation5 [shape = 'u8[16384]{0}', space=vmem, size = 0x4000, scoped, tag = 'input window, operand 1, single buffered']
    #allocation6 [shape = 's32[1]{0}', space=sflag, size = 0x4, scoped, tag = 'scoped memory for tpu_custom_call.1']
    #allocation7 [shape = 'u8[49152]{0}', space=vmem, size = 0xc000, scoped, tag = 'output window, operand 0, single buffered']
    %7 = vsyncpa [#allocation3], 0
    %8 = vsyncpa [#allocation6], 0
    %9 = vsyncpa [#allocation4], 0
    // Predicated region
    $region2: #{tpu_custom_call.1} parent=1 // pred_check
      _
    $region3: #{tpu_custom_call.1} parent=1 // pred_check_branch
      %11 = sbr.rel (0) target = $region5
    $region4: #{tpu_custom_call.1} parent=1 // pred_region
      %s12 = sadd.s32 0, 0
      %p13 = scmp.lt.s32.totalorder %s12, 0
      %s14 = scalar_select %p13, %s12, 0
      %s15 = smul.u32 4, %s14
      %s16 = ssub.s32 2, %s15
      %s17 = smul.u32 8, %s16
      %s18 = ssub.s32 32, %s17
      %s19 = sshll.u32 %s18, 4
      %20 = vsyncadd [#allocation3], %s19
      %p21 = scmp.ne.s32.totalorder 0, %s17
      %s22 = smul.addr %s15, 8
      %s23 = scalar_lea.hbm %s0, %s22
      %s24 = smul.u32 8, %s16
      %s25 = sshll.u32 %s23, 4
      %s26 = int_to_ptr.hbm [resolvable:$true] %s25
      %s27 = sshll.u32 [#allocation2], 4
      %s28 = int_to_ptr.vmem [resolvable:$true] %s27
      %s29 = sshll.u32 %s24, 4
      %33 = dma.hbm_to_vmem [thread:$0]  (%p21), %s26, %s29, %s28, [#allocation3], 128, 128, 8
    $region5: #{tpu_custom_call.1} parent=1 // pred_fallthru
      _
    // Predicated region
    $region6: #{tpu_custom_call.1} parent=1 // pred_check
      _
    $region7: #{tpu_custom_call.1} parent=1 // pred_check_branch
      %35 = sbr.rel (0) target = $region9
    $region8: #{tpu_custom_call.1} parent=1 // pred_region
      %s36 = sadd.s32 0, 0
      %p37 = scmp.lt.s32.totalorder %s36, 0
      %s38 = scalar_select %p37, %s36, 0
      %s39 = smul.u32 4, %s38
      %s40 = ssub.s32 2, %s39
      %s41 = smul.u32 8, %s40
      %s42 = ssub.s32 32, %s41
      %s43 = sshll.u32 %s42, 4
      %44 = vsyncadd [#allocation6], %s43
      %p45 = scmp.ne.s32.totalorder 0, %s41
      %s46 = smul.addr %s39, 8
      %s47 = scalar_lea.hbm %s1, %s46
      %s48 = smul.u32 8, %s40
      %s49 = sshll.u32 %s47, 4
      %s50 = int_to_ptr.hbm [resolvable:$true] %s49
      %s51 = sshll.u32 [#allocation5], 4
      %s52 = int_to_ptr.vmem [resolvable:$true] %s51
      %s53 = sshll.u32 %s48, 4
      %57 = dma.hbm_to_vmem [thread:$0]  (%p45), %s50, %s53, %s52, [#allocation6], 128, 128, 8
    $region9: #{tpu_custom_call.1} parent=1 // pred_fallthru
      _
    // Predicated region
    $region10: #{tpu_custom_call.1} parent=1 // pred_check
      _
    $region11: #{tpu_custom_call.1} parent=1 // pred_check_branch
      %59 = sbr.rel (0) target = $region13
    $region12: #{tpu_custom_call.1} parent=1 // pred_region
      %61 = dma.done [#allocation3], 512
    $region13: #{tpu_custom_call.1} parent=1 // pred_fallthru
      _
    // Predicated region
    $region14: #{tpu_custom_call.1} parent=1 // pred_check
      _
    $region15: #{tpu_custom_call.1} parent=1 // pred_check_branch
      %63 = sbr.rel (0) target = $region17
    $region16: #{tpu_custom_call.1} parent=1 // pred_region
      %65 = dma.done [#allocation6], 512
    $region17: #{tpu_custom_call.1} parent=1 // pred_fallthru
      _
    %s66 = sadd.s32 0, 0
    %p67 = scmp.lt.s32.totalorder %s66, 0
    %s68 = scalar_select %p67, %s66, 0
    %s69 = smul.u32 4, %s68
    %s70 = ssub.s32 2, %s69
    %s71 = smul.u32 8, %s70
    %s72 = sadd.s32 0, 0
    %p73 = scmp.lt.s32.totalorder %s72, 0
    %s74 = scalar_select %p73, %s72, 0
    %s75 = smul.u32 4, %s74
    %s76 = ssub.s32 2, %s75
    %s77 = smul.u32 8, %s76
    %p78 = scmp.eq.s32.totalorder 0, 0
    // Predicated region
    $region18: #{tpu_custom_call.1} parent=1 // pred_check
      %p79 = pneg %p78
    $region19: #{tpu_custom_call.1} parent=1 // pred_check_branch
      %81 = sbr.rel (%p79) target = $region21
    $region20: #{tpu_custom_call.1} parent=1 // pred_region
      %82 = vst [vmem:[#allocation7] sm:$0xff] 0.0
      %83 = vst [vmem:[#allocation7 + $0x8] sm:$0xff] 0.0
      %84 = vst [vmem:[#allocation7 + $0x10] sm:$0xff] 0.0
      %85 = vst [vmem:[#allocation7 + $0x18] sm:$0xff] 0.0
      %86 = vst [vmem:[#allocation7 + $0x20] sm:$0xff] 0.0
      %87 = vst [vmem:[#allocation7 + $0x28] sm:$0xff] 0.0
      %88 = vst [vmem:[#allocation7 + $0x30] sm:$0xff] 0.0
      %89 = vst [vmem:[#allocation7 + $0x38] sm:$0xff] 0.0
      %90 = vst [vmem:[#allocation7 + $0x40] sm:$0xff] 0.0
      %91 = vst [vmem:[#allocation7 + $0x48] sm:$0xff] 0.0
      %92 = vst [vmem:[#allocation7 + $0x50] sm:$0xff] 0.0
      %93 = vst [vmem:[#allocation7 + $0x58] sm:$0xff] 0.0
    $region21: #{tpu_custom_call.1} parent=1 // pred_fallthru
      _
    %v94 = vld [vmem:[#allocation2] sm:$0xff]
    %v95 = vld [vmem:[#allocation2 + $0x8] sm:$0xff]
    %v96 = vld [vmem:[#allocation2 + $0x10] sm:$0xff]
    %v97 = vld [vmem:[#allocation2 + $0x18] sm:$0xff]
    %v98 = vld [vmem:[#allocation5] sm:$0xff]
    %v99 = vld [vmem:[#allocation5 + $0x8] sm:$0xff]
    %v100 = vld [vmem:[#allocation5 + $0x10] sm:$0xff]
    %v101 = vld [vmem:[#allocation5 + $0x18] sm:$0xff]
    %s102 = sadd.s32 0, 0
    %s103 = smul.u32 %s102, 32
    %v104 = vlaneseq
    %v105 = vshrl.u32 %v104, 7
    %v106 = vadd.s32 %v105, 8
    %v107 = vadd.s32 %v105, 16
    %v108 = vadd.s32 %v105, 24
    %v109 = vstv %s103
    %v110 = vadd.s32 %v109, %v105
    %v111 = vadd.s32 %v109, %v106
    %v112 = vadd.s32 %v109, %v107
    %v113 = vadd.s32 %v109, %v108
    %vm114 = vcmp.lt.s32.totalorder %v110, 16
    %vm115 = vcmp.lt.s32.totalorder %v111, 16
    %vm116 = vcmp.lt.s32.totalorder %v112, 16
    %vm117 = vcmp.lt.s32.totalorder %v113, 16
    %v118 = vsel %vm114, %v94, 0.0
    %v119 = vsel %vm115, %v95, 0.0
    %v120 = vsel %vm116, %v96, 0.0
    %v121 = vsel %vm117, %v97, 0.0
    %v122 = vsel %vm114, %v98, 0.0
    %v123 = vsel %vm115, %v99, 0.0
    %v124 = vsel %vm116, %v100, 0.0
    %v125 = vsel %vm117, %v101, 0.0
    %v126 = vlog2.pop %v118
    %v127 = vmul.f32 %v126, 0.6931472
    %v128 = vlog2.pop %v119
    %v129 = vmul.f32 %v128, 0.6931472
    %v130 = vlog2.pop %v120
    %v131 = vmul.f32 %v130, 0.6931472
    %v132 = vlog2.pop %v121
    %v133 = vmul.f32 %v132, 0.6931472
    %v134 = vmax.f32 %v127, -100.0
    %v135 = vmax.f32 %v129, -100.0
    %v136 = vmax.f32 %v131, -100.0
    %v137 = vmax.f32 %v133, -100.0
    %v138 = vsub.f32 1.0, %v118
    %v139 = vsub.f32 1.0, %v119
    %v140 = vsub.f32 1.0, %v120
    %v141 = vsub.f32 1.0, %v121
    %v142 = vlog2.pop %v138
    %v143 = vmul.f32 %v142, 0.6931472
    %v144 = vlog2.pop %v139
    %v145 = vmul.f32 %v144, 0.6931472
    %v146 = vlog2.pop %v140
    %v147 = vmul.f32 %v146, 0.6931472
    %v148 = vlog2.pop %v141
    %v149 = vmul.f32 %v148, 0.6931472
    %v150 = vmax.f32 %v143, -100.0
    %v151 = vmax.f32 %v145, -100.0
    %v152 = vmax.f32 %v147, -100.0
    %v153 = vmax.f32 %v149, -100.0
    %v154 = vsub.f32 %v134, %v150
    %v155 = vsub.f32 %v135, %v151
    %v156 = vsub.f32 %v136, %v152
    %v157 = vsub.f32 %v137, %v153
    %v158 = vmul.f32 %v122, %v154
    %v159 = vmul.f32 %v123, %v155
    %v160 = vmul.f32 %v124, %v156
    %v161 = vmul.f32 %v125, %v157
    %v162 = vadd.f32 %v158, %v150
    %v163 = vadd.f32 %v159, %v151
    %v164 = vadd.f32 %v160, %v152
    %v165 = vadd.f32 %v161, %v153
    %v166 = vld [vmem:[#allocation7] sm:$0xff]
    %v167 = vld [vmem:[#allocation7 + $0x8] sm:$0xff]
    %v168 = vld [vmem:[#allocation7 + $0x10] sm:$0xff]
    %v169 = vld [vmem:[#allocation7 + $0x18] sm:$0xff]
    %v170 = vmul.f32 %v118, %v122
    %v171 = vmul.f32 %v119, %v123
    %v172 = vmul.f32 %v120, %v124
    %v173 = vmul.f32 %v121, %v125
    %v174 = vadd.f32 %v170, 0.0
    %v175 = vadd.f32 %v171, 0.0
    %v176 = vadd.f32 %v172, 0.0
    %v177 = vadd.f32 %v173, 0.0
    %v178 = vadd.f32 %v166, %v174
    %v179 = vadd.f32 %v167, %v175
    %v180 = vadd.f32 %v168, %v176
    %v181 = vadd.f32 %v169, %v177
    %182 = vst [vmem:[#allocation7] sm:$0xff] %v178
    %183 = vst [vmem:[#allocation7 + $0x8] sm:$0xff] %v179
    %184 = vst [vmem:[#allocation7 + $0x10] sm:$0xff] %v180
    %185 = vst [vmem:[#allocation7 + $0x18] sm:$0xff] %v181
    %s186 = scalar_lea.vmem [#allocation7], 32
    %v187 = vld [vmem:[%s186] sm:$0xff]
    %v188 = vld [vmem:[%s186 + $0x8] sm:$0xff]
    %v189 = vld [vmem:[%s186 + $0x10] sm:$0xff]
    %v190 = vld [vmem:[%s186 + $0x18] sm:$0xff]
    %v191 = vadd.f32 %v118, %v122
    %v192 = vadd.f32 %v119, %v123
    %v193 = vadd.f32 %v120, %v124
    %v194 = vadd.f32 %v121, %v125
    %v195 = vadd.f32 %v191, 0.0
    %v196 = vadd.f32 %v192, 0.0
    %v197 = vadd.f32 %v193, 0.0
    %v198 = vadd.f32 %v194, 0.0
    %v199 = vadd.f32 %v187, %v195
    %v200 = vadd.f32 %v188, %v196
    %v201 = vadd.f32 %v189, %v197
    %v202 = vadd.f32 %v190, %v198
    %203 = vst [vmem:[%s186] sm:$0xff] %v199
    %204 = vst [vmem:[%s186 + $0x8] sm:$0xff] %v200
    %205 = vst [vmem:[%s186 + $0x10] sm:$0xff] %v201
    %206 = vst [vmem:[%s186 + $0x18] sm:$0xff] %v202
    %s207 = scalar_lea.vmem [#allocation7], 64
    %v208 = vld [vmem:[%s207] sm:$0xff]
    %v209 = vld [vmem:[%s207 + $0x8] sm:$0xff]
    %v210 = vld [vmem:[%s207 + $0x10] sm:$0xff]
    %v211 = vld [vmem:[%s207 + $0x18] sm:$0xff]
    %v212 = vadd.f32 %v162, 0.0
    %v213 = vadd.f32 %v163, 0.0
    %v214 = vadd.f32 %v164, 0.0
    %v215 = vadd.f32 %v165, 0.0
    %v216 = vadd.f32 %v208, %v212
    %v217 = vadd.f32 %v209, %v213
    %v218 = vadd.f32 %v210, %v214
    %v219 = vadd.f32 %v211, %v215
    %220 = vst [vmem:[%s207] sm:$0xff] %v216
    %221 = vst [vmem:[%s207 + $0x8] sm:$0xff] %v217
    %222 = vst [vmem:[%s207 + $0x10] sm:$0xff] %v218
    %223 = vst [vmem:[%s207 + $0x18] sm:$0xff] %v219
    // Predicated region
    $region22: #{tpu_custom_call.1} parent=1 // pred_check
      _
    $region23: #{tpu_custom_call.1} parent=1 // pred_check_branch
      %225 = sbr.rel (0) target = $region25
    $region24: #{tpu_custom_call.1} parent=1 // pred_region
      %227 = vsyncadd [#allocation4], 0
      %s228 = sshll.u32 [#allocation7], 4
      %s229 = int_to_ptr.vmem [resolvable:$true] %s228
      %s230 = sshll.u32 %s2, 4
      %s231 = int_to_ptr.hbm [resolvable:$true] %s230
      %236 = dma.vmem_to_hbm [thread:$0]  %s229, 1536, %s231, [#allocation4], 128, 128, 8
    $region25: #{tpu_custom_call.1} parent=1 // pred_fallthru
      _
    // Predicated region
    $region26: #{tpu_custom_call.1} parent=1 // pred_check
      _
    $region27: #{tpu_custom_call.1} parent=1 // pred_check_branch
      %238 = sbr.rel (0) target = $region29
    $region28: #{tpu_custom_call.1} parent=1 // pred_region
      %240 = dma.done [#allocation4], 1536
    $region29: #{tpu_custom_call.1} parent=1 // pred_fallthru
      _
    %241 = vsyncpa [#allocation3], 1
    %242 = vsyncpa [#allocation6], 1
    %243 = vsyncpa [#allocation4], 1

</llo_original>
